<compile_context>
chip_gen: v7x
topology: tpu7x:2x2x1
jax: 0.10.0
libtpu: 0.0.40
codegen_flags: <defaults>
</compile_context>

<pallas_src>
import jax
import jax.numpy as jnp
from jax.experimental import pallas as pl
from jax.experimental.pallas import tpu as pltpu


def _round_up(n, m):
    return ((n + m - 1) // m) * m


def mlp_kernel(ue_ref, ie_ref, w1a_ref, w1b_ref, b1_ref,
               w2_ref, b2_ref, w3_ref, b3_ref, o_ref):
    ue = ue_ref[...]                                             # (tb, E)
    ie = ie_ref[...]                                             # (tb, E)
    # fc1 on the un-concatenated halves: [ue, ie] @ W1 == ue@W1a + ie@W1b
    h1 = (jnp.dot(ue, w1a_ref[...], preferred_element_type=jnp.float32)
          + jnp.dot(ie, w1b_ref[...], preferred_element_type=jnp.float32)
          + b1_ref[...])
    h1 = jnp.maximum(h1, 0.0)                                    # relu(fc1) -> (tb, 64)
    h2 = jnp.dot(h1, w2_ref[...], preferred_element_type=jnp.float32) + b2_ref[...]
    h2 = jnp.maximum(h2, 0.0)                                    # relu(fc2) -> (tb, 32)
    # fc3: N=1 matmul would waste an MXU pass -> VPU mul + XLU lane-reduce.
    o_ref[...] = jnp.sum(h2 * w3_ref[...], axis=-1, keepdims=True) + b3_ref[...]


def recommender_forward(users, isbns, params, *, tb=512):
    """Forward pass matching Recommender.forward(users, isbns) -> (B, 1)."""
    # --- glue: embedding lookups in plain JAX (no HBM concat) --------------
    ue = jnp.take(params["user_emb"], users.astype(jnp.int32), axis=0)   # (B, E)
    ie = jnp.take(params["isbn_emb"], isbns.astype(jnp.int32), axis=0)   # (B, E)
    B, E = ue.shape

    w1, b1 = params["w1"], params["b1"]            # (2E, 64), (1, 64)
    w2, b2 = params["w2"], params["b2"]            # (64, 32), (1, 32)
    w3, b3 = params["w3"], params["b3"]            # (32, 1),  (1, 1)

    # Split fc1 weight so the concat never materializes; fc3 weight as a row
    # vector for the VPU mul+reduce.  (Tiny slices / transposes, done once.)
    w1a = w1[:E, :]                                # (E, 64) — multiplies ue
    w1b = w1[E:, :]                                # (E, 64) — multiplies ie
    w3t = w3.T                                     # (1, 32)

    # Batch tile: large (amortize per-grid-step overhead, fill MXU), but never
    # bigger than the (8-aligned) batch.  Stays a multiple of 8 for layout.
    tb_eff = _round_up(max(8, min(tb, _round_up(B, 8))), 8)
    grid = (pl.cdiv(B, tb_eff),)

    cost = pl.CostEstimate(
        flops=2 * B * (2 * E * 64 + 64 * 32 + 32),
        transcendentals=0,
        bytes_accessed=4 * (B * 2 * E + B
                            + w1.size + b1.size + w2.size + b2.size
                            + w3t.size + b3.size),
    )

    const = lambda i: (0, 0)   # grid-invariant weight/bias blocks
    out = pl.pallas_call(
        mlp_kernel,
        out_shape=jax.ShapeDtypeStruct((B, 1), jnp.float32),
        grid=grid,
        in_specs=[
            pl.BlockSpec((tb_eff, E), lambda i: (i, 0)),   # user embeds tile
            pl.BlockSpec((tb_eff, E), lambda i: (i, 0)),   # isbn embeds tile
            pl.BlockSpec(w1a.shape, const),                # fc1 weight (user half)
            pl.BlockSpec(w1b.shape, const),                # fc1 weight (isbn half)
            pl.BlockSpec(b1.shape, const),                 # fc1 bias
            pl.BlockSpec(w2.shape, const),                 # fc2 weight
            pl.BlockSpec(b2.shape, const),                 # fc2 bias
            pl.BlockSpec(w3t.shape, const),                # fc3 weight (row)
            pl.BlockSpec(b3.shape, const),                 # fc3 bias
        ],
        out_specs=pl.BlockSpec((tb_eff, 1), lambda i: (i, 0)),
        compiler_params=pltpu.CompilerParams(
            dimension_semantics=("parallel",)),
        cost_estimate=cost,
    )(ue, ie, w1a, w1b, b1, w2, b2, w3t, b3)
    return out


def init_params(key, num_users, num_isbns, embedding_dim):
    ks = jax.random.split(key, 8)
    f = jnp.float32
    return {
        "user_emb": jax.random.normal(ks[0], (num_users, embedding_dim), f),
        "isbn_emb": jax.random.normal(ks[1], (num_isbns, embedding_dim), f),
        # Linear weights stored as (in, out) = PyTorch weight.T
        "w1": jax.random.normal(ks[2], (embedding_dim * 2, 64), f) * 0.1,
        "b1": jax.random.normal(ks[3], (1, 64), f) * 0.1,
        "w2": jax.random.normal(ks[4], (64, 32), f) * 0.1,
        "b2": jax.random.normal(ks[5], (1, 32), f) * 0.1,
        "w3": jax.random.normal(ks[6], (32, 1), f) * 0.1,
        "b3": jax.random.normal(ks[7], (1, 1), f) * 0.1,
    }


def reference_forward(users, isbns, params):
    ue = jnp.take(params["user_emb"], users.astype(jnp.int32), axis=0)
    ie = jnp.take(params["isbn_emb"], isbns.astype(jnp.int32), axis=0)
    x = jnp.concatenate([ue, ie], axis=1)
    x = jnp.maximum(x @ params["w1"] + params["b1"], 0.0)
    x = jnp.maximum(x @ params["w2"] + params["b2"], 0.0)
    return x @ params["w3"] + params["b3"]


if __name__ == "__main__":
    num_users, num_isbns, embedding_dim = 100, 200, 16
    batch = 40

    key = jax.random.PRNGKey(0)
    kp, ku, ki = jax.random.split(key, 3)
    params = init_params(kp, num_users, num_isbns, embedding_dim)

    users = jax.random.randint(ku, (batch,), 0, num_users, dtype=jnp.int32)
    isbns = jax.random.randint(ki, (batch,), 0, num_isbns, dtype=jnp.int32)

    ref = reference_forward(users, isbns, params)

    # Default (large) tile: whole small batch fits in one grid step.
    out = jax.block_until_ready(recommender_forward(users, isbns, params))
    assert out.shape == (batch, 1)
    assert jnp.allclose(out, ref, atol=1e-5, rtol=1e-5)

    # Small tile: exercises the multi-step grid and the partial final tile.
    out2 = jax.block_until_ready(recommender_forward(users, isbns, params, tb=16))
    assert jnp.allclose(out2, ref, atol=1e-5, rtol=1e-5)

    print("KERNEL_OK")
</pallas_src>

<mosaic_0001>
module attributes {stable_mosaic.version = 11 : i64} {
  func.func @mlp_kernel(%arg0: i32, %arg1: memref<40x16xf32, #tpu.memory_space<vmem>>, %arg2: memref<40x16xf32, #tpu.memory_space<vmem>>, %arg3: memref<16x64xf32, #tpu.memory_space<vmem>>, %arg4: memref<16x64xf32, #tpu.memory_space<vmem>>, %arg5: memref<1x64xf32, #tpu.memory_space<vmem>>, %arg6: memref<64x32xf32, #tpu.memory_space<vmem>>, %arg7: memref<1x32xf32, #tpu.memory_space<vmem>>, %arg8: memref<1x32xf32, #tpu.memory_space<vmem>>, %arg9: memref<1x1xf32, #tpu.memory_space<vmem>>, %arg10: memref<40x1xf32, #tpu.memory_space<vmem>>) attributes {dimension_semantics = [#tpu.dimension_semantics<parallel>], iteration_bounds = array<i64: 1>, scalar_prefetch = 0 : i64, scratch_operands = 0 : i64, tpu.core_type = #tpu.core_type<tc>, window_params = [{transform_indices = @transform_0, window_bounds = array<i64: 40, 16>}, {transform_indices = @transform_1, window_bounds = array<i64: 40, 16>}, {pipeline_mode = #tpu.pipeline_mode<synchronous>, transform_indices = @transform_2, window_bounds = array<i64: 16, 64>}, {pipeline_mode = #tpu.pipeline_mode<synchronous>, transform_indices = @transform_3, window_bounds = array<i64: 16, 64>}, {pipeline_mode = #tpu.pipeline_mode<synchronous>, transform_indices = @transform_4, window_bounds = array<i64: 1, 64>}, {pipeline_mode = #tpu.pipeline_mode<synchronous>, transform_indices = @transform_5, window_bounds = array<i64: 64, 32>}, {pipeline_mode = #tpu.pipeline_mode<synchronous>, transform_indices = @transform_6, window_bounds = array<i64: 1, 32>}, {pipeline_mode = #tpu.pipeline_mode<synchronous>, transform_indices = @transform_7, window_bounds = array<i64: 1, 32>}, {pipeline_mode = #tpu.pipeline_mode<synchronous>, transform_indices = @transform_8, window_bounds = array<i64: 1, 1>}, {transform_indices = @transform_9, window_bounds = array<i64: 40, 1>}]} {
    %c0 = arith.constant 0 : index
    %c0_0 = arith.constant 0 : index
    %0 = vector.load %arg1[%c0, %c0_0] : memref<40x16xf32, #tpu.memory_space<vmem>>, vector<40x16xf32>
    %c0_1 = arith.constant 0 : index
    %c0_2 = arith.constant 0 : index
    %1 = vector.load %arg2[%c0_1, %c0_2] : memref<40x16xf32, #tpu.memory_space<vmem>>, vector<40x16xf32>
    %c0_3 = arith.constant 0 : index
    %c0_4 = arith.constant 0 : index
    %2 = vector.load %arg3[%c0_3, %c0_4] : memref<16x64xf32, #tpu.memory_space<vmem>>, vector<16x64xf32>
    %cst = arith.constant dense<0.000000e+00> : vector<40x64xf32>
    %3 = tpu.matmul %0, %2, %cst {dimension_numbers = #tpu.dot_dimension_numbers<[1], [0], [0], [1], [0, 0, 1, 1], [], []>} : vector<40x16xf32>, vector<16x64xf32>, vector<40x64xf32> -> vector<40x64xf32>
    %c0_5 = arith.constant 0 : index
    %c0_6 = arith.constant 0 : index
    %4 = vector.load %arg4[%c0_5, %c0_6] : memref<16x64xf32, #tpu.memory_space<vmem>>, vector<16x64xf32>
    %cst_7 = arith.constant dense<0.000000e+00> : vector<40x64xf32>
    %5 = tpu.matmul %1, %4, %cst_7 {dimension_numbers = #tpu.dot_dimension_numbers<[1], [0], [0], [1], [0, 0, 1, 1], [], []>} : vector<40x16xf32>, vector<16x64xf32>, vector<40x64xf32> -> vector<40x64xf32>
    %6 = arith.addf %3, %5 : vector<40x64xf32>
    %c0_8 = arith.constant 0 : index
    %c0_9 = arith.constant 0 : index
    %7 = vector.load %arg5[%c0_8, %c0_9] : memref<1x64xf32, #tpu.memory_space<vmem>>, vector<1x64xf32>
    %8 = vector.broadcast %7 : vector<1x64xf32> to vector<40x64xf32>
    %9 = arith.addf %6, %8 : vector<40x64xf32>
    %cst_10 = arith.constant 0.000000e+00 : f32
    %10 = vector.broadcast %cst_10 : f32 to vector<40x64xf32>
    %11 = arith.maximumf %9, %10 : vector<40x64xf32>
    %c0_11 = arith.constant 0 : index
    %c0_12 = arith.constant 0 : index
    %12 = vector.load %arg6[%c0_11, %c0_12] : memref<64x32xf32, #tpu.memory_space<vmem>>, vector<64x32xf32>
    %cst_13 = arith.constant dense<0.000000e+00> : vector<40x32xf32>
    %13 = tpu.matmul %11, %12, %cst_13 {dimension_numbers = #tpu.dot_dimension_numbers<[1], [0], [0], [1], [0, 0, 1, 1], [], []>} : vector<40x64xf32>, vector<64x32xf32>, vector<40x32xf32> -> vector<40x32xf32>
    %c0_14 = arith.constant 0 : index
    %c0_15 = arith.constant 0 : index
    %14 = vector.load %arg7[%c0_14, %c0_15] : memref<1x32xf32, #tpu.memory_space<vmem>>, vector<1x32xf32>
    %15 = vector.broadcast %14 : vector<1x32xf32> to vector<40x32xf32>
    %16 = arith.addf %13, %15 : vector<40x32xf32>
    %cst_16 = arith.constant 0.000000e+00 : f32
    %17 = vector.broadcast %cst_16 : f32 to vector<40x32xf32>
    %18 = arith.maximumf %16, %17 : vector<40x32xf32>
    %c0_17 = arith.constant 0 : index
    %c0_18 = arith.constant 0 : index
    %19 = vector.load %arg8[%c0_17, %c0_18] : memref<1x32xf32, #tpu.memory_space<vmem>>, vector<1x32xf32>
    %20 = vector.broadcast %19 : vector<1x32xf32> to vector<40x32xf32>
    %21 = arith.mulf %18, %20 : vector<40x32xf32>
    %cst_19 = arith.constant dense<0.000000e+00> : vector<40xf32>
    %22 = vector.multi_reduction <add>, %21, %cst_19 [1] : vector<40x32xf32> to vector<40xf32>
    %23 = vector.shape_cast %22 : vector<40xf32> to vector<40x1xf32>
    %c0_20 = arith.constant 0 : index
    %c0_21 = arith.constant 0 : index
    %24 = vector.load %arg9[%c0_20, %c0_21] : memref<1x1xf32, #tpu.memory_space<vmem>>, vector<1x1xf32>
    %25 = vector.broadcast %24 : vector<1x1xf32> to vector<40x1xf32>
    %26 = arith.addf %23, %25 : vector<40x1xf32>
    %c0_22 = arith.constant 0 : index
    %c0_23 = arith.constant 0 : index
    %27 = vector.load %arg10[%c0_22, %c0_23] : memref<40x1xf32, #tpu.memory_space<vmem>>, vector<40x1xf32>
    tpu.vector_store %arg10[%c0_22, %c0_23], %26 {strides = array<i32>} : memref<40x1xf32, #tpu.memory_space<vmem>>, vector<40x1xf32>,
    return
  }
  func.func @transform_0(%arg0: i32) -> (i32, i32) {
    %c0_i32 = arith.constant 0 : i32
    %c0_i32_0 = arith.constant 0 : i32
    return %arg0, %c0_i32 : i32, i32
  }
  func.func @transform_1(%arg0: i32) -> (i32, i32) {
    %c0_i32 = arith.constant 0 : i32
    %c0_i32_0 = arith.constant 0 : i32
    return %arg0, %c0_i32 : i32, i32
  }
  func.func @transform_2(%arg0: i32) -> (i32, i32) {
    %c0_i32 = arith.constant 0 : i32
    %c0_i32_0 = arith.constant 0 : i32
    %c0_i32_1 = arith.constant 0 : i32
    return %c0_i32, %c0_i32_0 : i32, i32
  }
  func.func @transform_3(%arg0: i32) -> (i32, i32) {
    %c0_i32 = arith.constant 0 : i32
    %c0_i32_0 = arith.constant 0 : i32
    %c0_i32_1 = arith.constant 0 : i32
    return %c0_i32, %c0_i32_0 : i32, i32
  }
  func.func @transform_4(%arg0: i32) -> (i32, i32) {
    %c0_i32 = arith.constant 0 : i32
    %c0_i32_0 = arith.constant 0 : i32
    %c0_i32_1 = arith.constant 0 : i32
    return %c0_i32, %c0_i32_0 : i32, i32
  }
  func.func @transform_5(%arg0: i32) -> (i32, i32) {
    %c0_i32 = arith.constant 0 : i32
    %c0_i32_0 = arith.constant 0 : i32
    %c0_i32_1 = arith.constant 0 : i32
    return %c0_i32, %c0_i32_0 : i32, i32
  }
  func.func @transform_6(%arg0: i32) -> (i32, i32) {
    %c0_i32 = arith.constant 0 : i32
    %c0_i32_0 = arith.constant 0 : i32
    %c0_i32_1 = arith.constant 0 : i32
    return %c0_i32, %c0_i32_0 : i32, i32
  }
  func.func @transform_7(%arg0: i32) -> (i32, i32) {
    %c0_i32 = arith.constant 0 : i32
    %c0_i32_0 = arith.constant 0 : i32
    %c0_i32_1 = arith.constant 0 : i32
    return %c0_i32, %c0_i32_0 : i32, i32
  }
  func.func @transform_8(%arg0: i32) -> (i32, i32) {
    %c0_i32 = arith.constant 0 : i32
    %c0_i32_0 = arith.constant 0 : i32
    %c0_i32_1 = arith.constant 0 : i32
    return %c0_i32, %c0_i32_0 : i32, i32
  }
  func.func @transform_9(%arg0: i32) -> (i32, i32) {
    %c0_i32 = arith.constant 0 : i32
    %c0_i32_0 = arith.constant 0 : i32
    return %arg0, %c0_i32 : i32, i32
  }
}

</mosaic_0001>

<llo_original>
// kernel: tpu_custom_call.1
$region0: #{tpu_custom_call.1}
  #allocation0 [shape = 'u32[]', space=smem, size = 0x4, offset = 0x4, fixed_abs, tag = 'smem constant byte address 0x4 - core index']
  #allocation1 [shape = 'u32[144,128]{1,0:T(1,128)}', space=vmem, size = 0x12000, scoped, tag = 'internal scratch']
  #allocation2 [shape = 'f32[1,1]{1,0:T(1,128)S(1)}', space=vmem, size = 0x200, scoped, tag = 'scoped memory for tpu_custom_call.1']
  %s0 = inlined_call_operand.vmem [shape: f32[40,16], index: 0, kind: input, shape index: {}]
  %s1 = inlined_call_operand.vmem [shape: f32[40,16], index: 1, kind: input, shape index: {}]
  %s2 = inlined_call_operand.vmem [shape: f32[16,64], index: 2, kind: input, shape index: {}]
  %s3 = inlined_call_operand.vmem [shape: f32[16,64], index: 3, kind: input, shape index: {}]
  %s4 = inlined_call_operand.vmem [shape: f32[1,64], index: 4, kind: input, shape index: {}]
  %s5 = inlined_call_operand.vmem [shape: f32[64,32], index: 5, kind: input, shape index: {}]
  %s6 = inlined_call_operand.vmem [shape: f32[1,32], index: 6, kind: input, shape index: {}]
  %s7 = inlined_call_operand.vmem [shape: f32[1,32], index: 7, kind: input, shape index: {}]
  %s8 = inlined_call_operand.<no memory space> [shape: f32[1,1], index: 8, kind: input, shape index: {}]
  %s9 = inlined_call_operand.vmem [shape: f32[40,1], index: 9, kind: output, shape index: {}]
  %s10 = sld [smem:[#allocation0]]
  $region46: #{tpu_custom_call.1} parent=0
    _
  %s12 = ssub.s32 1, %s10
  %s13 = scalar_select 0, %s12, %s10
  %v14 = vstv %s8
  %15 = vst [vmem:[#allocation2] sm:$0x1] %v14
  // Predicated region
  $region2: #{tpu_custom_call.1} parent=0 // pred_check
    _
  $region3: #{tpu_custom_call.1} parent=0 // pred_check_branch
    %17 = sbr.rel (0) target = $region5
  $region4: #{tpu_custom_call.1} parent=0 // pred_region
    _
  $region5: #{tpu_custom_call.1} parent=0 // pred_fallthru
    _
  // Predicated region
  $region6: #{tpu_custom_call.1} parent=0 // pred_check
    _
  $region7: #{tpu_custom_call.1} parent=0 // pred_check_branch
    %19 = sbr.rel (0) target = $region9
  $region8: #{tpu_custom_call.1} parent=0 // pred_region
    _
  $region9: #{tpu_custom_call.1} parent=0 // pred_fallthru
    _
  // Predicated region
  $region10: #{tpu_custom_call.1} parent=0 // pred_check
    _
  $region11: #{tpu_custom_call.1} parent=0 // pred_check_branch
    %21 = sbr.rel (0) target = $region13
  $region12: #{tpu_custom_call.1} parent=0 // pred_region
    _
  $region13: #{tpu_custom_call.1} parent=0 // pred_fallthru
    _
  // Predicated region
  $region14: #{tpu_custom_call.1} parent=0 // pred_check
    _
  $region15: #{tpu_custom_call.1} parent=0 // pred_check_branch
    %23 = sbr.rel (0) target = $region17
  $region16: #{tpu_custom_call.1} parent=0 // pred_region
    _
  $region17: #{tpu_custom_call.1} parent=0 // pred_fallthru
    _
  // Predicated region
  $region18: #{tpu_custom_call.1} parent=0 // pred_check
    _
  $region19: #{tpu_custom_call.1} parent=0 // pred_check_branch
    %25 = sbr.rel (0) target = $region21
  $region20: #{tpu_custom_call.1} parent=0 // pred_region
    _
  $region21: #{tpu_custom_call.1} parent=0 // pred_fallthru
    _
  // Predicated region
  $region22: #{tpu_custom_call.1} parent=0 // pred_check
    _
  $region23: #{tpu_custom_call.1} parent=0 // pred_check_branch
    %27 = sbr.rel (0) target = $region25
  $region24: #{tpu_custom_call.1} parent=0 // pred_region
    _
  $region25: #{tpu_custom_call.1} parent=0 // pred_fallthru
    _
  // Predicated region
  $region26: #{tpu_custom_call.1} parent=0 // pred_check
    _
  $region27: #{tpu_custom_call.1} parent=0 // pred_check_branch
    %29 = sbr.rel (0) target = $region29
  $region28: #{tpu_custom_call.1} parent=0 // pred_region
    _
  $region29: #{tpu_custom_call.1} parent=0 // pred_fallthru
    _
  // Predicated region
  $region30: #{tpu_custom_call.1} parent=0 // pred_check
    _
  $region31: #{tpu_custom_call.1} parent=0 // pred_check_branch
    %31 = sbr.rel (0) target = $region33
  $region32: #{tpu_custom_call.1} parent=0 // pred_region
    _
  $region33: #{tpu_custom_call.1} parent=0 // pred_fallthru
    _
  // Predicated region
  $region34: #{tpu_custom_call.1} parent=0 // pred_check
    _
  $region35: #{tpu_custom_call.1} parent=0 // pred_check_branch
    %33 = sbr.rel (0) target = $region37
  $region36: #{tpu_custom_call.1} parent=0 // pred_region
    _
  $region37: #{tpu_custom_call.1} parent=0 // pred_fallthru
    _
  %v34 = vld [vmem:[%s0] sm:$0xff]
  %v35 = vld [vmem:[%s0 + $0x8] sm:$0xff]
  %v36 = vld [vmem:[%s0 + $0x10] sm:$0xff]
  %v37 = vld [vmem:[%s0 + $0x18] sm:$0xff]
  %v38 = vld [vmem:[%s0 + $0x20] sm:$0xff]
  %v39 = vld [vmem:[%s1] sm:$0xff]
  %v40 = vld [vmem:[%s1 + $0x8] sm:$0xff]
  %v41 = vld [vmem:[%s1 + $0x10] sm:$0xff]
  %v42 = vld [vmem:[%s1 + $0x18] sm:$0xff]
  %v43 = vld [vmem:[%s1 + $0x20] sm:$0xff]
  %v44 = vld [vmem:[%s2] sm:$0xff]
  %v45 = vld [vmem:[%s2 + $0x8] sm:$0xff]
  %v46 = vld [vmem:[%s3] sm:$0xff]
  %v47 = vld [vmem:[%s3 + $0x8] sm:$0xff]
  %vm48 = vcmask 130048
  %v50 = vsel %vm48, %v39, 0
  %v53 = vsel %vm48, %v40, 0
  %v56 = vsel %vm48, %v41, 0
  %v59 = vsel %vm48, %v42, 0
  %v62 = vsel %vm48, %v43, 0
  %64 = vmatprep.subr.mxu0 0.0
  %65 = vmatpush1.msra.mxu0 %v46
  %66 = vmatprep.subr.mxu0 0.0
  %67 = vmatpush1.msra.mxu0 %v47
  %68 = vmatprep.subr.mxu0 0.0
  %69 = vmatpush1.msra.mxu0 0.0
  %70 = vmatprep.subr.mxu0 0.0
  %71 = vmatpush1.msra.mxu0 0.0
  %72 = vmatprep.subr.mxu0 0.0
  %73 = vmatpush1.msra.mxu0 0.0
  %74 = vmatprep.subr.mxu0 0.0
  %75 = vmatpush1.msra.mxu0 0.0
  %76 = vmatprep.subr.mxu0 0.0
  %77 = vmatpush1.msra.mxu0 0.0
  %78 = vmatprep.subr.mxu0 0.0
  %79 = vmatpush1.msra.mxu0 0.0
  %80 = vmatprep.subr.mxu0 0.0
  %81 = vmatpush1.msra.mxu0 0.0
  %82 = vmatprep.subr.mxu0 0.0
  %83 = vmatpush1.msra.mxu0 0.0
  %84 = vmatprep.subr.mxu0 0.0
  %85 = vmatpush1.msra.mxu0 0.0
  %86 = vmatprep.subr.mxu0 0.0
  %87 = vmatpush1.msra.mxu0 0.0
  %88 = vmatprep.subr.mxu0 0.0
  %89 = vmatpush1.msra.mxu0 0.0
  %90 = vmatprep.subr.mxu0 0.0
  %91 = vmatpush1.msra.mxu0 0.0
  %92 = vmatprep.subr.mxu0 0.0
  %93 = vmatpush1.msra.mxu0 0.0
  %94 = vmatprep.subr.mxu0 0.0
  %95 = vmatpush1.msra.mxu0 0.0
  %96 = vmatprep.subr.mxu0 0.0
  %97 = vmatpush1.msra.mxu0 0.0
  %98 = vmatprep.subr.mxu0 0.0
  %99 = vmatpush1.msra.mxu0 0.0
  %100 = vmatprep.subr.mxu0 0.0
  %101 = vmatpush1.msra.mxu0 0.0
  %102 = vmatprep.subr.mxu0 0.0
  %103 = vmatpush1.msra.mxu0 0.0
  %104 = vmatprep.subr.mxu0 0.0
  %105 = vmatpush1.msra.mxu0 0.0
  %106 = vmatprep.subr.mxu0 0.0
  %107 = vmatpush1.msra.mxu0 0.0
  %108 = vmatprep.subr.mxu0 0.0
  %109 = vmatpush1.msra.mxu0 0.0
  %110 = vmatprep.subr.mxu0 0.0
  %111 = vmatpush1.msra.mxu0 0.0
  %112 = vmatprep.subr.mxu0 0.0
  %113 = vmatpush1.msra.mxu0 0.0
  %114 = vmatprep.subr.mxu0 0.0
  %115 = vmatpush1.msra.mxu0 0.0
  %116 = vmatprep.subr.mxu0 0.0
  %117 = vmatpush1.msra.mxu0 0.0
  %118 = vmatprep.subr.mxu0 0.0
  %119 = vmatpush1.msra.mxu0 0.0
  %120 = vmatprep.subr.mxu0 0.0
  %121 = vmatpush1.msra.mxu0 0.0
  %122 = vmatprep.subr.mxu0 0.0
  %123 = vmatpush1.msra.mxu0 0.0
  %124 = vmatprep.subr.mxu0 0.0
  %125 = vmatpush1.msra.mxu0 0.0
  %126 = vmatprep.subr.mxu0 0.0
  %127 = vmatpush1.msra.mxu0 0.0
  %128 = vmatprep.mubr.f32.mxu0 0.0
  %129 = vmatmul.mubr.f32.gmra.mrb[0].mxu0 %v50
  %v130 = vpop.f32.mrb[0].mxu0
  %v131 = vadd.f32 0.0, %v130
  %v132 = vpop.f32.mrb[0].mxu0
  %133 = vmatprep.mubr.f32.mxu0 0.0
  %134 = vmatmul.mubr.f32.gmra.mrb[0].mxu0 %v53
  %v135 = vpop.f32.mrb[0].mxu0
  %v136 = vadd.f32 0.0, %v135
  %v137 = vpop.f32.mrb[0].mxu0
  %138 = vmatprep.mubr.f32.mxu0 0.0
  %139 = vmatmul.mubr.f32.gmra.mrb[0].mxu0 %v56
  %v140 = vpop.f32.mrb[0].mxu0
  %v141 = vadd.f32 0.0, %v140
  %v142 = vpop.f32.mrb[0].mxu0
  %143 = vmatprep.mubr.f32.mxu0 0.0
  %144 = vmatmul.mubr.f32.gmra.mrb[0].mxu0 %v59
  %v145 = vpop.f32.mrb[0].mxu0
  %v146 = vadd.f32 0.0, %v145
  %v147 = vpop.f32.mrb[0].mxu0
  %148 = vmatprep.mubr.f32.mxu0 0.0
  %149 = vmatmul.mubr.f32.gmra.mrb[0].mxu0 %v62
  %v150 = vpop.f32.mrb[0].mxu0
  %v151 = vadd.f32 0.0, %v150
  %v152 = vpop.f32.mrb[0].mxu0
  %153 = vdwg.mxu0
  %v155 = vsel %vm48, %v34, 0
  %v158 = vsel %vm48, %v35, 0
  %v161 = vsel %vm48, %v36, 0
  %v164 = vsel %vm48, %v37, 0
  %v167 = vsel %vm48, %v38, 0
  %169 = vmatprep.subr.mxu0 0.0
  %170 = vmatpush1.msra.mxu0 %v44
  %171 = vmatprep.subr.mxu0 0.0
  %172 = vmatpush1.msra.mxu0 %v45
  %173 = vmatprep.subr.mxu0 0.0
  %174 = vmatpush1.msra.mxu0 0.0
  %175 = vmatprep.subr.mxu0 0.0
  %176 = vmatpush1.msra.mxu0 0.0
  %177 = vmatprep.subr.mxu0 0.0
  %178 = vmatpush1.msra.mxu0 0.0
  %179 = vmatprep.subr.mxu0 0.0
  %180 = vmatpush1.msra.mxu0 0.0
  %181 = vmatprep.subr.mxu0 0.0
  %182 = vmatpush1.msra.mxu0 0.0
  %183 = vmatprep.subr.mxu0 0.0
  %184 = vmatpush1.msra.mxu0 0.0
  %185 = vmatprep.subr.mxu0 0.0
  %186 = vmatpush1.msra.mxu0 0.0
  %187 = vmatprep.subr.mxu0 0.0
  %188 = vmatpush1.msra.mxu0 0.0
  %189 = vmatprep.subr.mxu0 0.0
  %190 = vmatpush1.msra.mxu0 0.0
  %191 = vmatprep.subr.mxu0 0.0
  %192 = vmatpush1.msra.mxu0 0.0
  %193 = vmatprep.subr.mxu0 0.0
  %194 = vmatpush1.msra.mxu0 0.0
  %195 = vmatprep.subr.mxu0 0.0
  %196 = vmatpush1.msra.mxu0 0.0
  %197 = vmatprep.subr.mxu0 0.0
  %198 = vmatpush1.msra.mxu0 0.0
  %199 = vmatprep.subr.mxu0 0.0
  %200 = vmatpush1.msra.mxu0 0.0
  %201 = vmatprep.subr.mxu0 0.0
  %202 = vmatpush1.msra.mxu0 0.0
  %203 = vmatprep.subr.mxu0 0.0
  %204 = vmatpush1.msra.mxu0 0.0
  %205 = vmatprep.subr.mxu0 0.0
  %206 = vmatpush1.msra.mxu0 0.0
  %207 = vmatprep.subr.mxu0 0.0
  %208 = vmatpush1.msra.mxu0 0.0
  %209 = vmatprep.subr.mxu0 0.0
  %210 = vmatpush1.msra.mxu0 0.0
  %211 = vmatprep.subr.mxu0 0.0
  %212 = vmatpush1.msra.mxu0 0.0
  %213 = vmatprep.subr.mxu0 0.0
  %214 = vmatpush1.msra.mxu0 0.0
  %215 = vmatprep.subr.mxu0 0.0
  %216 = vmatpush1.msra.mxu0 0.0
  %217 = vmatprep.subr.mxu0 0.0
  %218 = vmatpush1.msra.mxu0 0.0
  %219 = vmatprep.subr.mxu0 0.0
  %220 = vmatpush1.msra.mxu0 0.0
  %221 = vmatprep.subr.mxu0 0.0
  %222 = vmatpush1.msra.mxu0 0.0
  %223 = vmatprep.subr.mxu0 0.0
  %224 = vmatpush1.msra.mxu0 0.0
  %225 = vmatprep.subr.mxu0 0.0
  %226 = vmatpush1.msra.mxu0 0.0
  %227 = vmatprep.subr.mxu0 0.0
  %228 = vmatpush1.msra.mxu0 0.0
  %229 = vmatprep.subr.mxu0 0.0
  %230 = vmatpush1.msra.mxu0 0.0
  %231 = vmatprep.subr.mxu0 0.0
  %232 = vmatpush1.msra.mxu0 0.0
  %233 = vmatprep.mubr.f32.mxu0 0.0
  %234 = vmatmul.mubr.f32.gmra.mrb[0].mxu0 %v155
  %v235 = vpop.f32.mrb[0].mxu0
  %v236 = vadd.f32 %v131, %v235
  %v237 = vpop.f32.mrb[0].mxu0
  %238 = vmatprep.mubr.f32.mxu0 0.0
  %239 = vmatmul.mubr.f32.gmra.mrb[0].mxu0 %v158
  %v240 = vpop.f32.mrb[0].mxu0
  %v241 = vadd.f32 %v136, %v240
  %v242 = vpop.f32.mrb[0].mxu0
  %243 = vmatprep.mubr.f32.mxu0 0.0
  %244 = vmatmul.mubr.f32.gmra.mrb[0].mxu0 %v161
  %v245 = vpop.f32.mrb[0].mxu0
  %v246 = vadd.f32 %v141, %v245
  %v247 = vpop.f32.mrb[0].mxu0
  %248 = vmatprep.mubr.f32.mxu0 0.0
  %249 = vmatmul.mubr.f32.gmra.mrb[0].mxu0 %v164
  %v250 = vpop.f32.mrb[0].mxu0
  %v251 = vadd.f32 %v146, %v250
  %v252 = vpop.f32.mrb[0].mxu0
  %253 = vmatprep.mubr.f32.mxu0 0.0
  %254 = vmatmul.mubr.f32.gmra.mrb[0].mxu0 %v167
  %v255 = vpop.f32.mrb[0].mxu0
  %v256 = vadd.f32 %v151, %v255
  %v257 = vpop.f32.mrb[0].mxu0
  %258 = vdwg.mxu0
  %v259 = vld [vmem:[%s4] sm:$0x1]
  %v261 = vlaneseq
  %v262 = vshrl.u32 %v261, 7
  %v263 = vsub.s32 0, %v262
  %v264 = vrot.slane %v259, %v263
  %v266 = vadd.f32 %v236, %v264
  %v267 = vadd.f32 %v241, %v264
  %v268 = vadd.f32 %v246, %v264
  %v269 = vadd.f32 %v251, %v264
  %v270 = vadd.f32 %v256, %v264
  %v271 = vmax.f32 %v266, 0.0
  %v272 = vmax.f32 %v267, 0.0
  %v273 = vmax.f32 %v268, 0.0
  %v274 = vmax.f32 %v269, 0.0
  %v275 = vmax.f32 %v270, 0.0
  %v276 = vld [vmem:[%s5] sm:$0xff]
  %v277 = vld [vmem:[%s5 + $0x8] sm:$0xff]
  %v278 = vld [vmem:[%s5 + $0x10] sm:$0xff]
  %v279 = vld [vmem:[%s5 + $0x18] sm:$0xff]
  %v280 = vld [vmem:[%s5 + $0x20] sm:$0xff]
  %v281 = vld [vmem:[%s5 + $0x28] sm:$0xff]
  %v282 = vld [vmem:[%s5 + $0x30] sm:$0xff]
  %v283 = vld [vmem:[%s5 + $0x38] sm:$0xff]
  %v284 = vld [vmem:[%s6] sm:$0x1]
  %v286 = vlaneseq
  %v287 = vshrl.u32 %v286, 7
  %v288 = vsub.s32 0, %v287
  %v289 = vrot.slane %v284, %v288
  %vm291 = vcmask 523264
  %v293 = vsel %vm291, %v271, 0
  %v296 = vsel %vm291, %v272, 0
  %v299 = vsel %vm291, %v273, 0
  %v302 = vsel %vm291, %v274, 0
  %v305 = vsel %vm291, %v275, 0
  %307 = vmatprep.subr.mxu0 0.0
  %308 = vmatpush1.msra.mxu0 %v276
  %309 = vmatprep.subr.mxu0 0.0
  %310 = vmatpush1.msra.mxu0 %v277
  %311 = vmatprep.subr.mxu0 0.0
  %312 = vmatpush1.msra.mxu0 %v278
  %313 = vmatprep.subr.mxu0 0.0
  %314 = vmatpush1.msra.mxu0 %v279
  %315 = vmatprep.subr.mxu0 0.0
  %316 = vmatpush1.msra.mxu0 %v280
  %317 = vmatprep.subr.mxu0 0.0
  %318 = vmatpush1.msra.mxu0 %v281
  %319 = vmatprep.subr.mxu0 0.0
  %320 = vmatpush1.msra.mxu0 %v282
  %321 = vmatprep.subr.mxu0 0.0
  %322 = vmatpush1.msra.mxu0 %v283
  %323 = vmatprep.subr.mxu0 0.0
  %324 = vmatpush1.msra.mxu0 0.0
  %325 = vmatprep.subr.mxu0 0.0
  %326 = vmatpush1.msra.mxu0 0.0
  %327 = vmatprep.subr.mxu0 0.0
  %328 = vmatpush1.msra.mxu0 0.0
  %329 = vmatprep.subr.mxu0 0.0
  %330 = vmatpush1.msra.mxu0 0.0
  %331 = vmatprep.subr.mxu0 0.0
  %332 = vmatpush1.msra.mxu0 0.0
  %333 = vmatprep.subr.mxu0 0.0
  %334 = vmatpush1.msra.mxu0 0.0
  %335 = vmatprep.subr.mxu0 0.0
  %336 = vmatpush1.msra.mxu0 0.0
  %337 = vmatprep.subr.mxu0 0.0
  %338 = vmatpush1.msra.mxu0 0.0
  %339 = vmatprep.subr.mxu0 0.0
  %340 = vmatpush1.msra.mxu0 0.0
  %341 = vmatprep.subr.mxu0 0.0
  %342 = vmatpush1.msra.mxu0 0.0
  %343 = vmatprep.subr.mxu0 0.0
  %344 = vmatpush1.msra.mxu0 0.0
  %345 = vmatprep.subr.mxu0 0.0
  %346 = vmatpush1.msra.mxu0 0.0
  %347 = vmatprep.subr.mxu0 0.0
  %348 = vmatpush1.msra.mxu0 0.0
  %349 = vmatprep.subr.mxu0 0.0
  %350 = vmatpush1.msra.mxu0 0.0
  %351 = vmatprep.subr.mxu0 0.0
  %352 = vmatpush1.msra.mxu0 0.0
  %353 = vmatprep.subr.mxu0 0.0
  %354 = vmatpush1.msra.mxu0 0.0
  %355 = vmatprep.subr.mxu0 0.0
  %356 = vmatpush1.msra.mxu0 0.0
  %357 = vmatprep.subr.mxu0 0.0
  %358 = vmatpush1.msra.mxu0 0.0
  %359 = vmatprep.subr.mxu0 0.0
  %360 = vmatpush1.msra.mxu0 0.0
  %361 = vmatprep.subr.mxu0 0.0
  %362 = vmatpush1.msra.mxu0 0.0
  %363 = vmatprep.subr.mxu0 0.0
  %364 = vmatpush1.msra.mxu0 0.0
  %365 = vmatprep.subr.mxu0 0.0
  %366 = vmatpush1.msra.mxu0 0.0
  %367 = vmatprep.subr.mxu0 0.0
  %368 = vmatpush1.msra.mxu0 0.0
  %369 = vmatprep.subr.mxu0 0.0
  %370 = vmatpush1.msra.mxu0 0.0
  %371 = vmatprep.mubr.f32.mxu0 0.0
  %372 = vmatmul.mubr.f32.gmra.mrb[0].mxu0 %v293
  %v373 = vpop.f32.mrb[0].mxu0
  %v374 = vadd.f32 %v289, %v373
  %v375 = vpop.f32.mrb[0].mxu0
  %376 = vmatprep.mubr.f32.mxu0 0.0
  %377 = vmatmul.mubr.f32.gmra.mrb[0].mxu0 %v296
  %v378 = vpop.f32.mrb[0].mxu0
  %v379 = vadd.f32 %v289, %v378
  %v380 = vpop.f32.mrb[0].mxu0
  %381 = vmatprep.mubr.f32.mxu0 0.0
  %382 = vmatmul.mubr.f32.gmra.mrb[0].mxu0 %v299
  %v383 = vpop.f32.mrb[0].mxu0
  %v384 = vadd.f32 %v289, %v383
  %v385 = vpop.f32.mrb[0].mxu0
  %386 = vmatprep.mubr.f32.mxu0 0.0
  %387 = vmatmul.mubr.f32.gmra.mrb[0].mxu0 %v302
  %v388 = vpop.f32.mrb[0].mxu0
  %v389 = vadd.f32 %v289, %v388
  %v390 = vpop.f32.mrb[0].mxu0
  %391 = vmatprep.mubr.f32.mxu0 0.0
  %392 = vmatmul.mubr.f32.gmra.mrb[0].mxu0 %v305
  %v393 = vpop.f32.mrb[0].mxu0
  %v394 = vadd.f32 %v289, %v393
  %v395 = vpop.f32.mrb[0].mxu0
  %396 = vdwg.mxu0
  %v397 = vmax.f32 %v374, 0.0
  %v398 = vmax.f32 %v379, 0.0
  %v399 = vmax.f32 %v384, 0.0
  %v400 = vmax.f32 %v389, 0.0
  %v401 = vmax.f32 %v394, 0.0
  %v402 = vld [vmem:[%s7] sm:$0x1]
  %v404 = vlaneseq
  %v405 = vshrl.u32 %v404, 7
  %v406 = vsub.s32 0, %v405
  %v407 = vrot.slane %v402, %v406
  %v409 = vmul.f32 %v397, %v407
  %v410 = vmul.f32 %v398, %v407
  %v411 = vmul.f32 %v399, %v407
  %v412 = vmul.f32 %v400, %v407
  %v413 = vmul.f32 %v401, %v407
  %vm414 = vcmask 261120
  %v415 = vsel %vm414, %v409, 0.0
  %416 = vadd.xlane.f32.xlu0 %v415
  %v417 = vpop.xlane.xlu0 %416
  %v418 = vsel %vm414, %v410, 0.0
  %419 = vadd.xlane.f32.xlu0 %v418
  %v420 = vpop.xlane.xlu0 %419
  %v421 = vsel %vm414, %v411, 0.0
  %422 = vadd.xlane.f32.xlu0 %v421
  %v423 = vpop.xlane.xlu0 %422
  %v424 = vsel %vm414, %v412, 0.0
  %425 = vadd.xlane.f32.xlu0 %v424
  %v426 = vpop.xlane.xlu0 %425
  %v427 = vsel %vm414, %v413, 0.0
  %428 = vadd.xlane.f32.xlu0 %v427
  %v429 = vpop.xlane.xlu0 %428
  %v430 = vld [vmem:[#allocation2] sm:$0x1]
  %v432 = vlaneseq
  %v433 = vshrl.u32 %v432, 7
  %v434 = vsub.s32 0, %v433
  %v435 = vrot.slane %v430, %v434
  %v437 = vadd.f32 %v417, %v435
  %v438 = vadd.f32 %v420, %v435
  %v439 = vadd.f32 %v423, %v435
  %v440 = vadd.f32 %v426, %v435
  %v441 = vadd.f32 %v429, %v435
  %vm442 = vcmask 7168
  %443 = vst.msk [vmem:[%s9] sm:$0xff] %vm442, %v437
  %444 = vst.msk [vmem:[%s9 + $0x8] sm:$0xff] %vm442, %v438
  %445 = vst.msk [vmem:[%s9 + $0x10] sm:$0xff] %vm442, %v439
  %446 = vst.msk [vmem:[%s9 + $0x18] sm:$0xff] %vm442, %v440
  %447 = vst.msk [vmem:[%s9 + $0x20] sm:$0xff] %vm442, %v441
  // Predicated region
  $region38: #{tpu_custom_call.1} parent=0 // pred_check
    _
  $region39: #{tpu_custom_call.1} parent=0 // pred_check_branch
    %449 = sbr.rel (0) target = $region41
  $region40: #{tpu_custom_call.1} parent=0 // pred_region
    _
  $region41: #{tpu_custom_call.1} parent=0 // pred_fallthru
    _
  // Predicated region
  $region42: #{tpu_custom_call.1} parent=0 // pred_check
    _
  $region43: #{tpu_custom_call.1} parent=0 // pred_check_branch
    %451 = sbr.rel (0) target = $region45
  $region44: #{tpu_custom_call.1} parent=0 // pred_region
    _
  $region45: #{tpu_custom_call.1} parent=0 // pred_fallthru
    _

</llo_original>
